<compile_context>
chip_gen: v5e
topology: v5e:2x2
jax: 0.10.0
libtpu: 0.0.40
codegen_flags: <defaults>
</compile_context>

<pallas_src>
import functools

import jax
import jax.numpy as jnp
from jax.experimental import pallas as pl
from jax.experimental.pallas import tpu as pltpu

LANES = 128    # lane-pad every feature dim (all fan_outs <= 32 here)
TILE_M = 512   # batch tile when M is large (multiple of 256 fills the v6e/v7x MXU)


# ----------------------------------------------------------------------------
# Fused whole-model kernel
# ----------------------------------------------------------------------------
def _vae_fused_kernel(x_ref, w_ref, b_ref, dec_ref, mulv_ref, *,
                      relu_flags, n_enc, n_dec, k_pad):
    """One kernel for the whole forward pass.

    x:    (tile_m, 128) f32
    w:    (L, k_pad, 128) bf16   (BN + bias folded; K padded only to max fan_in)
    b:    (L, 1, 128)     f32
    dec:  (tile_m, 128) f32      decode_out in lanes [:inpd]
    mulv: (tile_m, 128) f32      mu in lanes [:latent], logvar in [latent:2*latent]
    """

    def layer(h, i):
        # padded lanes of h are zero and padded weight rows are zero -> exact
        lhs = h[:, :k_pad].astype(jnp.bfloat16)
        y = jnp.dot(lhs, w_ref[i], preferred_element_type=jnp.float32)
        y = y + b_ref[i]                       # bias (+ folded BN shift) in f32
        if relu_flags[i]:
            y = jnp.maximum(y, 0.0)
        return y

    h = x_ref[...]

    # encodingLayers (Dropout == identity in eval)
    for i in range(n_enc):
        h = layer(h, i)

    # fc_mu / fc_sigma packed into a single matmul on encode_out
    mulv_ref[...] = layer(h, n_enc).astype(mulv_ref.dtype)

    # decode path: fc_mu is folded offline into samplingLayers[0]
    # (reparameterize == mu in eval mode), so it consumes encode_out directly.
    for i in range(n_enc + 1, n_enc + 1 + n_dec):
        h = layer(h, i)
    dec_ref[...] = h.astype(dec_ref.dtype)


# ----------------------------------------------------------------------------
# Wrapper (jit this whole function so pad + kernel + slices fuse into one call)
# ----------------------------------------------------------------------------
def autoencoder_forward(w, b, x, *, relu_flags, n_enc, n_dec, k_pad,
                        inpd, latent_dim):
    """Returns (decode_out, mu, logvar) matching Autoencoder.forward (eval)."""
    M, F = x.shape
    L = w.shape[0]
    kernel = functools.partial(_vae_fused_kernel, relu_flags=relu_flags,
                               n_enc=n_enc, n_dec=n_dec, k_pad=k_pad)

    if M <= TILE_M:
        m_pad = max(8, -(-M // 8) * 8)          # sublane-align, stay gridless
        grid_m = None
    else:
        m_pad = -(-M // TILE_M) * TILE_M
        grid_m = m_pad // TILE_M

    x_pad = jnp.zeros((m_pad, LANES), jnp.float32).at[:M, :F].set(
        x.astype(jnp.float32))

    out_shape = (jax.ShapeDtypeStruct((m_pad, LANES), jnp.float32),
                 jax.ShapeDtypeStruct((m_pad, LANES), jnp.float32))

    if grid_m is None:
        vmem = pl.BlockSpec(memory_space=pltpu.MemorySpace.VMEM)
        dec_p, mulv_p = pl.pallas_call(
            kernel, out_shape=out_shape,
            in_specs=[vmem, vmem, vmem],
            out_specs=(vmem, vmem),
        )(x_pad, w, b)
    else:
        dec_p, mulv_p = pl.pallas_call(
            kernel, out_shape=out_shape, grid=(grid_m,),
            in_specs=[pl.BlockSpec((TILE_M, LANES), lambda i: (i, 0)),
                      pl.BlockSpec((L, k_pad, LANES), lambda i: (0, 0, 0)),
                      pl.BlockSpec((L, 1, LANES), lambda i: (0, 0, 0))],
            out_specs=(pl.BlockSpec((TILE_M, LANES), lambda i: (i, 0)),
                       pl.BlockSpec((TILE_M, LANES), lambda i: (i, 0))),
            compiler_params=pltpu.CompilerParams(
                dimension_semantics=("parallel",)),
        )(x_pad, w, b)

    return (dec_p[:M, :inpd],
            mulv_p[:M, :latent_dim],
            mulv_p[:M, latent_dim:2 * latent_dim])


# ----------------------------------------------------------------------------
# Deterministic parameter construction (nn.Linear / nn.BatchNorm1d eval, folded)
# ----------------------------------------------------------------------------
def _linear_init(key, fan_in, fan_out):
    kw, kb = jax.random.split(key)
    bound = 1.0 / jnp.sqrt(jnp.float32(fan_in))
    w = jax.random.uniform(kw, (fan_in, fan_out), jnp.float32, -bound, bound)
    b = jax.random.uniform(kb, (fan_out,), jnp.float32, -bound, bound)
    return w, b


def _bn_fold(key, n, eps=1e-5):
    # BatchNorm1d (eval): y = (x - mean)/sqrt(var+eps)*gamma + beta  ->  affine
    kg, kb, km, kv = jax.random.split(key, 4)
    gamma = 1.0 + 0.1 * jax.random.normal(kg, (n,), jnp.float32)
    beta = 0.1 * jax.random.normal(kb, (n,), jnp.float32)
    mean = 0.1 * jax.random.normal(km, (n,), jnp.float32)
    var = jnp.abs(1.0 + 0.1 * jax.random.normal(kv, (n,), jnp.float32))
    scale = gamma / jnp.sqrt(var + eps)
    shift = beta - mean * scale
    return scale, shift


def init_autoencoder_params(key, inpd, hidden, latent_dim):
    keys = iter(jax.random.split(key, 64))

    def lin(fan_in, fan_out, *, bn, relu):
        kl, kn = jax.random.split(next(keys))
        w, b = _linear_init(kl, fan_in, fan_out)
        if bn:
            scale, shift = _bn_fold(kn, fan_out)
            w = w * scale[None, :]   # fold BN scale into weights
            b = b * scale + shift    # fold BN into bias
        return {"w": w, "b": b, "relu": relu}

    # Original module structure (BN already folded; Dropout identity in eval).
    enc, s = [], inpd
    for h in hidden:
        enc.append(lin(s, h, bn=True, relu=True)); s = h
    enc.append(lin(s, latent_dim, bn=True, relu=False))
    fc_mu = lin(latent_dim, latent_dim, bn=False, relu=False)
    fc_sigma = lin(latent_dim, latent_dim, bn=False, relu=False)
    hidden_rev = hidden[::-1]
    samp = [lin(latent_dim, latent_dim, bn=True, relu=True),
            lin(latent_dim, hidden_rev[0], bn=True, relu=True)]
    dec, s = [], hidden_rev[0]
    for h in hidden_rev:
        dec.append(lin(s, h, bn=True, relu=True)); s = h
    dec.append(lin(s, inpd, bn=True, relu=False))
    ref = {"enc": enc, "fc_mu": fc_mu, "fc_sigma": fc_sigma,
           "samp": samp, "dec": dec}

    # --- fused kernel slab: bf16 weights, K padded only to max fan_in,
    #     fc_mu|fc_sigma packed, fc_mu folded into samplingLayers[0].
    fan_ins = [l["w"].shape[0] for l in enc + samp + dec] + [latent_dim]
    k_pad = max(8, -(-max(fan_ins) // 8) * 8)
    fused = []

    def push(w, b, relu):
        fi, fo = w.shape
        wp = jnp.zeros((k_pad, LANES), jnp.float32).at[:fi, :fo].set(w)
        bp = jnp.zeros((1, LANES), jnp.float32).at[0, :fo].set(b)
        fused.append((wp, bp, bool(relu)))

    for l in enc:
        push(l["w"], l["b"], l["relu"])
    # packed fc_mu | fc_sigma (one matmul, two lane-ranges of the output)
    push(jnp.concatenate([fc_mu["w"], fc_sigma["w"]], axis=1),
         jnp.concatenate([fc_mu["b"], fc_sigma["b"]], axis=0), False)
    # fc_mu folded into samplingLayers[0] (linear-linear composition)
    push(fc_mu["w"] @ samp[0]["w"],
         fc_mu["b"] @ samp[0]["w"] + samp[0]["b"], True)
    push(samp[1]["w"], samp[1]["b"], samp[1]["relu"])
    for l in dec:
        push(l["w"], l["b"], l["relu"])

    slabs = {"w": jnp.stack([f[0] for f in fused]).astype(jnp.bfloat16),
             "b": jnp.stack([f[1] for f in fused])}          # bias stays f32
    cfg = {"relu": tuple(f[2] for f in fused),
           "n_enc": len(enc),
           "n_dec": len(fused) - len(enc) - 1,
           "k_pad": int(k_pad)}
    return ref, slabs, cfg


# ----------------------------------------------------------------------------
# Pure-JAX reference (original 10-layer structure, f32) for correctness check
# ----------------------------------------------------------------------------
def _reference_forward(ref, x, latent_dim):
    def apply(h, l):
        y = h @ l["w"] + l["b"]
        return jnp.maximum(y, 0.0) if l["relu"] else y

    h = x.astype(jnp.float32)
    for l in ref["enc"]:
        h = apply(h, l)
    mu = h @ ref["fc_mu"]["w"] + ref["fc_mu"]["b"]
    logvar = h @ ref["fc_sigma"]["w"] + ref["fc_sigma"]["b"]
    h = mu                                # reparameterize == mu in eval mode
    for l in ref["samp"] + ref["dec"]:
        h = apply(h, l)
    return h, mu, logvar


if __name__ == "__main__":
    key = jax.random.PRNGKey(0)
    pkey, xkey, xkey2 = jax.random.split(key, 3)

    inpd = 32           # DataBuilder.GetNumOfFeatures()
    hidden = [32, 16]
    latent_dim = 3

    ref_params, slabs, cfg = init_autoencoder_params(pkey, inpd, hidden, latent_dim)

    fwd = jax.jit(functools.partial(
        autoencoder_forward,
        relu_flags=cfg["relu"], n_enc=cfg["n_enc"], n_dec=cfg["n_dec"],
        k_pad=cfg["k_pad"], inpd=inpd, latent_dim=latent_dim))

    # --- small batch: gridless single-shot kernel ---
    x_small = jax.random.normal(xkey, (8, inpd), dtype=jnp.float32)
    dec, mu, logvar = fwd(slabs["w"], slabs["b"], x_small)
    jax.block_until_ready((dec, mu, logvar))
    assert dec.shape == (8, inpd)
    assert mu.shape == (8, latent_dim)
    assert logvar.shape == (8, latent_dim)
    rd, rm, rl = _reference_forward(ref_params, x_small, latent_dim)
    assert jnp.allclose(dec, rd, atol=5e-2, rtol=5e-2)
    assert jnp.allclose(mu, rm, atol=5e-2, rtol=5e-2)
    assert jnp.allclose(logvar, rl, atol=5e-2, rtol=5e-2)

    # --- larger batch: 1-D parallel grid over M, weights stay VMEM-resident ---
    x_big = jax.random.normal(xkey2, (1536, inpd), dtype=jnp.float32)
    dec_b, mu_b, logvar_b = fwd(slabs["w"], slabs["b"], x_big)
    jax.block_until_ready((dec_b, mu_b, logvar_b))
    rd_b, rm_b, rl_b = _reference_forward(ref_params, x_big, latent_dim)
    assert jnp.allclose(dec_b, rd_b, atol=5e-2, rtol=5e-2)
    assert jnp.allclose(mu_b, rm_b, atol=5e-2, rtol=5e-2)
    assert jnp.allclose(logvar_b, rl_b, atol=5e-2, rtol=5e-2)

    print("KERNEL_OK")
</pallas_src>

<mosaic_0001>
module attributes {stable_mosaic.version = 11 : i64} {
  func.func @_vae_fused_kernel(%arg0: memref<8x128xf32, #tpu.memory_space<vmem>>, %arg1: memref<9x32x128xbf16, #tpu.memory_space<vmem>>, %arg2: memref<9x1x128xf32, #tpu.memory_space<vmem>>, %arg3: memref<8x128xf32, #tpu.memory_space<vmem>>, %arg4: memref<8x128xf32, #tpu.memory_space<vmem>>) attributes {dimension_semantics = [], scalar_prefetch = 0 : i64, scratch_operands = 0 : i64, tpu.core_type = #tpu.core_type<tc>} {
    %c0 = arith.constant 0 : index
    %c0_0 = arith.constant 0 : index
    %0 = vector.load %arg0[%c0, %c0_0] : memref<8x128xf32, #tpu.memory_space<vmem>>, vector<8x128xf32>
    %1 = vector.extract_strided_slice %0 {offsets = [0, 0], sizes = [8, 32], strides = [1, 1]} : vector<8x128xf32> to vector<8x32xf32>
    %2 = arith.truncf %1 : vector<8x32xf32> to vector<8x32xbf16>
    %c0_1 = arith.constant 0 : index
    %c0_2 = arith.constant 0 : index
    %c0_3 = arith.constant 0 : index
    %3 = vector.load %arg1[%c0_1, %c0_2, %c0_3] : memref<9x32x128xbf16, #tpu.memory_space<vmem>>, vector<1x32x128xbf16>
    %4 = vector.shape_cast %3 : vector<1x32x128xbf16> to vector<32x128xbf16>
    %cst = arith.constant dense<0.000000e+00> : vector<8x128xf32>
    %5 = tpu.matmul %2, %4, %cst {dimension_numbers = #tpu.dot_dimension_numbers<[1], [0], [0], [1], [0, 0, 1, 1], [], []>} : vector<8x32xbf16>, vector<32x128xbf16>, vector<8x128xf32> -> vector<8x128xf32>
    %c0_4 = arith.constant 0 : index
    %c0_5 = arith.constant 0 : index
    %c0_6 = arith.constant 0 : index
    %6 = vector.load %arg2[%c0_4, %c0_5, %c0_6] : memref<9x1x128xf32, #tpu.memory_space<vmem>>, vector<1x1x128xf32>
    %7 = vector.shape_cast %6 : vector<1x1x128xf32> to vector<1x128xf32>
    %8 = vector.broadcast %7 : vector<1x128xf32> to vector<8x128xf32>
    %9 = arith.addf %5, %8 : vector<8x128xf32>
    %cst_7 = arith.constant 0.000000e+00 : f32
    %10 = vector.broadcast %cst_7 : f32 to vector<8x128xf32>
    %11 = arith.maximumf %9, %10 : vector<8x128xf32>
    %12 = vector.extract_strided_slice %11 {offsets = [0, 0], sizes = [8, 32], strides = [1, 1]} : vector<8x128xf32> to vector<8x32xf32>
    %13 = arith.truncf %12 : vector<8x32xf32> to vector<8x32xbf16>
    %c1 = arith.constant 1 : index
    %c0_8 = arith.constant 0 : index
    %c0_9 = arith.constant 0 : index
    %14 = vector.load %arg1[%c1, %c0_8, %c0_9] : memref<9x32x128xbf16, #tpu.memory_space<vmem>>, vector<1x32x128xbf16>
    %15 = vector.shape_cast %14 : vector<1x32x128xbf16> to vector<32x128xbf16>
    %cst_10 = arith.constant dense<0.000000e+00> : vector<8x128xf32>
    %16 = tpu.matmul %13, %15, %cst_10 {dimension_numbers = #tpu.dot_dimension_numbers<[1], [0], [0], [1], [0, 0, 1, 1], [], []>} : vector<8x32xbf16>, vector<32x128xbf16>, vector<8x128xf32> -> vector<8x128xf32>
    %c1_11 = arith.constant 1 : index
    %c0_12 = arith.constant 0 : index
    %c0_13 = arith.constant 0 : index
    %17 = vector.load %arg2[%c1_11, %c0_12, %c0_13] : memref<9x1x128xf32, #tpu.memory_space<vmem>>, vector<1x1x128xf32>
    %18 = vector.shape_cast %17 : vector<1x1x128xf32> to vector<1x128xf32>
    %19 = vector.broadcast %18 : vector<1x128xf32> to vector<8x128xf32>
    %20 = arith.addf %16, %19 : vector<8x128xf32>
    %cst_14 = arith.constant 0.000000e+00 : f32
    %21 = vector.broadcast %cst_14 : f32 to vector<8x128xf32>
    %22 = arith.maximumf %20, %21 : vector<8x128xf32>
    %23 = vector.extract_strided_slice %22 {offsets = [0, 0], sizes = [8, 32], strides = [1, 1]} : vector<8x128xf32> to vector<8x32xf32>
    %24 = arith.truncf %23 : vector<8x32xf32> to vector<8x32xbf16>
    %c2 = arith.constant 2 : index
    %c0_15 = arith.constant 0 : index
    %c0_16 = arith.constant 0 : index
    %25 = vector.load %arg1[%c2, %c0_15, %c0_16] : memref<9x32x128xbf16, #tpu.memory_space<vmem>>, vector<1x32x128xbf16>
    %26 = vector.shape_cast %25 : vector<1x32x128xbf16> to vector<32x128xbf16>
    %cst_17 = arith.constant dense<0.000000e+00> : vector<8x128xf32>
    %27 = tpu.matmul %24, %26, %cst_17 {dimension_numbers = #tpu.dot_dimension_numbers<[1], [0], [0], [1], [0, 0, 1, 1], [], []>} : vector<8x32xbf16>, vector<32x128xbf16>, vector<8x128xf32> -> vector<8x128xf32>
    %c2_18 = arith.constant 2 : index
    %c0_19 = arith.constant 0 : index
    %c0_20 = arith.constant 0 : index
    %28 = vector.load %arg2[%c2_18, %c0_19, %c0_20] : memref<9x1x128xf32, #tpu.memory_space<vmem>>, vector<1x1x128xf32>
    %29 = vector.shape_cast %28 : vector<1x1x128xf32> to vector<1x128xf32>
    %30 = vector.broadcast %29 : vector<1x128xf32> to vector<8x128xf32>
    %31 = arith.addf %27, %30 : vector<8x128xf32>
    %32 = vector.extract_strided_slice %31 {offsets = [0, 0], sizes = [8, 32], strides = [1, 1]} : vector<8x128xf32> to vector<8x32xf32>
    %33 = arith.truncf %32 : vector<8x32xf32> to vector<8x32xbf16>
    %c3 = arith.constant 3 : index
    %c0_21 = arith.constant 0 : index
    %c0_22 = arith.constant 0 : index
    %34 = vector.load %arg1[%c3, %c0_21, %c0_22] : memref<9x32x128xbf16, #tpu.memory_space<vmem>>, vector<1x32x128xbf16>
    %35 = vector.shape_cast %34 : vector<1x32x128xbf16> to vector<32x128xbf16>
    %cst_23 = arith.constant dense<0.000000e+00> : vector<8x128xf32>
    %36 = tpu.matmul %33, %35, %cst_23 {dimension_numbers = #tpu.dot_dimension_numbers<[1], [0], [0], [1], [0, 0, 1, 1], [], []>} : vector<8x32xbf16>, vector<32x128xbf16>, vector<8x128xf32> -> vector<8x128xf32>
    %c3_24 = arith.constant 3 : index
    %c0_25 = arith.constant 0 : index
    %c0_26 = arith.constant 0 : index
    %37 = vector.load %arg2[%c3_24, %c0_25, %c0_26] : memref<9x1x128xf32, #tpu.memory_space<vmem>>, vector<1x1x128xf32>
    %38 = vector.shape_cast %37 : vector<1x1x128xf32> to vector<1x128xf32>
    %39 = vector.broadcast %38 : vector<1x128xf32> to vector<8x128xf32>
    %40 = arith.addf %36, %39 : vector<8x128xf32>
    %c0_27 = arith.constant 0 : index
    %c0_28 = arith.constant 0 : index
    %41 = vector.load %arg4[%c0_27, %c0_28] : memref<8x128xf32, #tpu.memory_space<vmem>>, vector<8x128xf32>
    tpu.vector_store %arg4[%c0_27, %c0_28], %40 {strides = array<i32>} : memref<8x128xf32, #tpu.memory_space<vmem>>, vector<8x128xf32>,
    %42 = vector.extract_strided_slice %31 {offsets = [0, 0], sizes = [8, 32], strides = [1, 1]} : vector<8x128xf32> to vector<8x32xf32>
    %43 = arith.truncf %42 : vector<8x32xf32> to vector<8x32xbf16>
    %c4 = arith.constant 4 : index
    %c0_29 = arith.constant 0 : index
    %c0_30 = arith.constant 0 : index
    %44 = vector.load %arg1[%c4, %c0_29, %c0_30] : memref<9x32x128xbf16, #tpu.memory_space<vmem>>, vector<1x32x128xbf16>
    %45 = vector.shape_cast %44 : vector<1x32x128xbf16> to vector<32x128xbf16>
    %cst_31 = arith.constant dense<0.000000e+00> : vector<8x128xf32>
    %46 = tpu.matmul %43, %45, %cst_31 {dimension_numbers = #tpu.dot_dimension_numbers<[1], [0], [0], [1], [0, 0, 1, 1], [], []>} : vector<8x32xbf16>, vector<32x128xbf16>, vector<8x128xf32> -> vector<8x128xf32>
    %c4_32 = arith.constant 4 : index
    %c0_33 = arith.constant 0 : index
    %c0_34 = arith.constant 0 : index
    %47 = vector.load %arg2[%c4_32, %c0_33, %c0_34] : memref<9x1x128xf32, #tpu.memory_space<vmem>>, vector<1x1x128xf32>
    %48 = vector.shape_cast %47 : vector<1x1x128xf32> to vector<1x128xf32>
    %49 = vector.broadcast %48 : vector<1x128xf32> to vector<8x128xf32>
    %50 = arith.addf %46, %49 : vector<8x128xf32>
    %cst_35 = arith.constant 0.000000e+00 : f32
    %51 = vector.broadcast %cst_35 : f32 to vector<8x128xf32>
    %52 = arith.maximumf %50, %51 : vector<8x128xf32>
    %53 = vector.extract_strided_slice %52 {offsets = [0, 0], sizes = [8, 32], strides = [1, 1]} : vector<8x128xf32> to vector<8x32xf32>
    %54 = arith.truncf %53 : vector<8x32xf32> to vector<8x32xbf16>
    %c5 = arith.constant 5 : index
    %c0_36 = arith.constant 0 : index
    %c0_37 = arith.constant 0 : index
    %55 = vector.load %arg1[%c5, %c0_36, %c0_37] : memref<9x32x128xbf16, #tpu.memory_space<vmem>>, vector<1x32x128xbf16>
    %56 = vector.shape_cast %55 : vector<1x32x128xbf16> to vector<32x128xbf16>
    %cst_38 = arith.constant dense<0.000000e+00> : vector<8x128xf32>
    %57 = tpu.matmul %54, %56, %cst_38 {dimension_numbers = #tpu.dot_dimension_numbers<[1], [0], [0], [1], [0, 0, 1, 1], [], []>} : vector<8x32xbf16>, vector<32x128xbf16>, vector<8x128xf32> -> vector<8x128xf32>
    %c5_39 = arith.constant 5 : index
    %c0_40 = arith.constant 0 : index
    %c0_41 = arith.constant 0 : index
    %58 = vector.load %arg2[%c5_39, %c0_40, %c0_41] : memref<9x1x128xf32, #tpu.memory_space<vmem>>, vector<1x1x128xf32>
    %59 = vector.shape_cast %58 : vector<1x1x128xf32> to vector<1x128xf32>
    %60 = vector.broadcast %59 : vector<1x128xf32> to vector<8x128xf32>
    %61 = arith.addf %57, %60 : vector<8x128xf32>
    %cst_42 = arith.constant 0.000000e+00 : f32
    %62 = vector.broadcast %cst_42 : f32 to vector<8x128xf32>
    %63 = arith.maximumf %61, %62 : vector<8x128xf32>
    %64 = vector.extract_strided_slice %63 {offsets = [0, 0], sizes = [8, 32], strides = [1, 1]} : vector<8x128xf32> to vector<8x32xf32>
    %65 = arith.truncf %64 : vector<8x32xf32> to vector<8x32xbf16>
    %c6 = arith.constant 6 : index
    %c0_43 = arith.constant 0 : index
    %c0_44 = arith.constant 0 : index
    %66 = vector.load %arg1[%c6, %c0_43, %c0_44] : memref<9x32x128xbf16, #tpu.memory_space<vmem>>, vector<1x32x128xbf16>
    %67 = vector.shape_cast %66 : vector<1x32x128xbf16> to vector<32x128xbf16>
    %cst_45 = arith.constant dense<0.000000e+00> : vector<8x128xf32>
    %68 = tpu.matmul %65, %67, %cst_45 {dimension_numbers = #tpu.dot_dimension_numbers<[1], [0], [0], [1], [0, 0, 1, 1], [], []>} : vector<8x32xbf16>, vector<32x128xbf16>, vector<8x128xf32> -> vector<8x128xf32>
    %c6_46 = arith.constant 6 : index
    %c0_47 = arith.constant 0 : index
    %c0_48 = arith.constant 0 : index
    %69 = vector.load %arg2[%c6_46, %c0_47, %c0_48] : memref<9x1x128xf32, #tpu.memory_space<vmem>>, vector<1x1x128xf32>
    %70 = vector.shape_cast %69 : vector<1x1x128xf32> to vector<1x128xf32>
    %71 = vector.broadcast %70 : vector<1x128xf32> to vector<8x128xf32>
    %72 = arith.addf %68, %71 : vector<8x128xf32>
    %cst_49 = arith.constant 0.000000e+00 : f32
    %73 = vector.broadcast %cst_49 : f32 to vector<8x128xf32>
    %74 = arith.maximumf %72, %73 : vector<8x128xf32>
    %75 = vector.extract_strided_slice %74 {offsets = [0, 0], sizes = [8, 32], strides = [1, 1]} : vector<8x128xf32> to vector<8x32xf32>
    %76 = arith.truncf %75 : vector<8x32xf32> to vector<8x32xbf16>
    %c7 = arith.constant 7 : index
    %c0_50 = arith.constant 0 : index
    %c0_51 = arith.constant 0 : index
    %77 = vector.load %arg1[%c7, %c0_50, %c0_51] : memref<9x32x128xbf16, #tpu.memory_space<vmem>>, vector<1x32x128xbf16>
    %78 = vector.shape_cast %77 : vector<1x32x128xbf16> to vector<32x128xbf16>
    %cst_52 = arith.constant dense<0.000000e+00> : vector<8x128xf32>
    %79 = tpu.matmul %76, %78, %cst_52 {dimension_numbers = #tpu.dot_dimension_numbers<[1], [0], [0], [1], [0, 0, 1, 1], [], []>} : vector<8x32xbf16>, vector<32x128xbf16>, vector<8x128xf32> -> vector<8x128xf32>
    %c7_53 = arith.constant 7 : index
    %c0_54 = arith.constant 0 : index
    %c0_55 = arith.constant 0 : index
    %80 = vector.load %arg2[%c7_53, %c0_54, %c0_55] : memref<9x1x128xf32, #tpu.memory_space<vmem>>, vector<1x1x128xf32>
    %81 = vector.shape_cast %80 : vector<1x1x128xf32> to vector<1x128xf32>
    %82 = vector.broadcast %81 : vector<1x128xf32> to vector<8x128xf32>
    %83 = arith.addf %79, %82 : vector<8x128xf32>
    %cst_56 = arith.constant 0.000000e+00 : f32
    %84 = vector.broadcast %cst_56 : f32 to vector<8x128xf32>
    %85 = arith.maximumf %83, %84 : vector<8x128xf32>
    %86 = vector.extract_strided_slice %85 {offsets = [0, 0], sizes = [8, 32], strides = [1, 1]} : vector<8x128xf32> to vector<8x32xf32>
    %87 = arith.truncf %86 : vector<8x32xf32> to vector<8x32xbf16>
    %c8 = arith.constant 8 : index
    %c0_57 = arith.constant 0 : index
    %c0_58 = arith.constant 0 : index
    %88 = vector.load %arg1[%c8, %c0_57, %c0_58] : memref<9x32x128xbf16, #tpu.memory_space<vmem>>, vector<1x32x128xbf16>
    %89 = vector.shape_cast %88 : vector<1x32x128xbf16> to vector<32x128xbf16>
    %cst_59 = arith.constant dense<0.000000e+00> : vector<8x128xf32>
    %90 = tpu.matmul %87, %89, %cst_59 {dimension_numbers = #tpu.dot_dimension_numbers<[1], [0], [0], [1], [0, 0, 1, 1], [], []>} : vector<8x32xbf16>, vector<32x128xbf16>, vector<8x128xf32> -> vector<8x128xf32>
    %c8_60 = arith.constant 8 : index
    %c0_61 = arith.constant 0 : index
    %c0_62 = arith.constant 0 : index
    %91 = vector.load %arg2[%c8_60, %c0_61, %c0_62] : memref<9x1x128xf32, #tpu.memory_space<vmem>>, vector<1x1x128xf32>
    %92 = vector.shape_cast %91 : vector<1x1x128xf32> to vector<1x128xf32>
    %93 = vector.broadcast %92 : vector<1x128xf32> to vector<8x128xf32>
    %94 = arith.addf %90, %93 : vector<8x128xf32>
    %c0_63 = arith.constant 0 : index
    %c0_64 = arith.constant 0 : index
    %95 = vector.load %arg3[%c0_63, %c0_64] : memref<8x128xf32, #tpu.memory_space<vmem>>, vector<8x128xf32>
    tpu.vector_store %arg3[%c0_63, %c0_64], %94 {strides = array<i32>} : memref<8x128xf32, #tpu.memory_space<vmem>>, vector<8x128xf32>,
    return
  }
}

</mosaic_0001>

<llo_original>
// kernel: autoencoder_forward.1
$region0: #{autoencoder_forward.1}
  #allocation0 [shape = 'u32[]', space=smem, size = 0x4, offset = 0x4, fixed_abs, tag = 'smem constant byte address 0x4 - core index']
  #allocation1 [shape = 'u32[72,128]{1,0:T(1,128)}', space=vmem, size = 0x9000, scoped, tag = 'internal scratch']
  %s0 = inlined_call_operand.vmem [shape: f32[8,128], index: 0, kind: input, shape index: {}]
  %s1 = inlined_call_operand.hbm [shape: bf16[9,32,128], index: 1, kind: input, shape index: {}]
  %s2 = inlined_call_operand.vmem [shape: f32[9,1,128], index: 2, kind: input, shape index: {}]
  %s3 = inlined_call_operand.hbm [shape: f32[8,128], index: 3, kind: output, shape index: {0}]
  %s4 = inlined_call_operand.vmem [shape: f32[8,128], index: 4, kind: output, shape index: {1}]
  %5 = xla_tuple %s3, %s4
  %s6 = sld [smem:[#allocation0]]
  $region34: #{autoencoder_forward.1} parent=0
    _
  %s8 = ssub.s32 1, %s6
  %s9 = scalar_select 0, %s8, %s6
  $region1: #{autoencoder_forward.1} parent=0
    #allocation2 [shape = 'u8[73728]{0}', space=vmem, size = 0x12000, scoped, tag = 'input window, operand 1, single buffered']
    #allocation3 [shape = 's32[1]{0}', space=sflag, size = 0x4, scoped, tag = 'scoped memory for autoencoder_forward.1']
    #allocation4 [shape = 's32[1]{0}', space=sflag, size = 0x4, scoped, tag = 'scoped memory for autoencoder_forward.1']
    #allocation5 [shape = 'u8[4096]{0}', space=vmem, size = 0x1000, scoped, tag = 'output window, operand 0, single buffered']
    %10 = vsyncpa [#allocation3], 0
    %11 = vsyncpa [#allocation4], 0
    // Predicated region
    $region2: #{autoencoder_forward.1} parent=1 // pred_check
      _
    $region3: #{autoencoder_forward.1} parent=1 // pred_check_branch
      %13 = sbr.rel (0) target = $region5
    $region4: #{autoencoder_forward.1} parent=1 // pred_region
      _
    $region5: #{autoencoder_forward.1} parent=1 // pred_fallthru
      _
    // Predicated region
    $region6: #{autoencoder_forward.1} parent=1 // pred_check
      _
    $region7: #{autoencoder_forward.1} parent=1 // pred_check_branch
      %15 = sbr.rel (0) target = $region9
    $region8: #{autoencoder_forward.1} parent=1 // pred_region
      %17 = vsyncadd [#allocation3], 0
      %s18 = sshll.u32 %s1, 4
      %s19 = int_to_ptr.hbm [resolvable:$true] %s18
      %s20 = sshll.u32 [#allocation2], 4
      %s21 = int_to_ptr.vmem [resolvable:$true] %s20
      %26 = dma.hbm_to_vmem [thread:$0]  %s19, 2304, %s21, [#allocation3], 64, 64, 4
    $region9: #{autoencoder_forward.1} parent=1 // pred_fallthru
      _
    // Predicated region
    $region10: #{autoencoder_forward.1} parent=1 // pred_check
      _
    $region11: #{autoencoder_forward.1} parent=1 // pred_check_branch
      %28 = sbr.rel (0) target = $region13
    $region12: #{autoencoder_forward.1} parent=1 // pred_region
      _
    $region13: #{autoencoder_forward.1} parent=1 // pred_fallthru
      _
    // Predicated region
    $region14: #{autoencoder_forward.1} parent=1 // pred_check
      _
    $region15: #{autoencoder_forward.1} parent=1 // pred_check_branch
      %30 = sbr.rel (0) target = $region17
    $region16: #{autoencoder_forward.1} parent=1 // pred_region
      %32 = dma.done [#allocation3], 2304
    $region17: #{autoencoder_forward.1} parent=1 // pred_fallthru
      _
    %v34 = vld [vmem:[%s0] sm:$0xff]
    %v35 = vpack.c.bf16 %v34, %v34
    %v36 = vld [vmem:[#allocation2] sm:$0xf]
    %v37 = vld [vmem:[#allocation2 + $0x4] sm:$0xf]
    %v38 = vld [vmem:[#allocation2 + $0x8] sm:$0xf]
    %v39 = vld [vmem:[#allocation2 + $0xc] sm:$0xf]
    %v40 = vld [vmem:[%s2] sm:$0x1]
    %v42 = vperm.slane %v40, 0
    %v48 = vunpack.c.l.b16 %v36
    %v49 = vunpack.c.l.b16 %v37
    %v50 = vunpack.c.l.b16 %v38
    %v51 = vunpack.c.l.b16 %v39
    %v52 = vpack.c.b16 %v49, %v48
    %v53 = vpack.c.b16 %v51, %v50
    %vm56 = vcmask 261120
    %v58 = vsel %vm56, %v35, 0
    %60 = vmatpush.bf16.msra.mxu0 0
    %61 = vmatpush.bf16.msra.mxu0 0
    %62 = vmatpush.bf16.msra.mxu0 0
    %63 = vmatpush.bf16.msra.mxu0 0
    %64 = vmatpush.bf16.msra.mxu0 0
    %65 = vmatpush.bf16.msra.mxu0 0
    %66 = vmatpush.bf16.msra.mxu0 %v53
    %67 = vmatpush.bf16.msra.mxu0 %v52
    %68 = vmatmul.bf16.gmra.mxu0 %v58
    %v69 = vpop.f32.mrf.mxu0
    %v70 = vadd.f32 %v42, %v69
    %v71 = vpop.f32.mrf.mxu0
    %72 = vdwg.mxu0
    %v73 = vmax.f32 %v70, 0.0
    %v74 = vpack.c.bf16 %v73, %v73
    %s75 = scalar_lea.vmem [#allocation2], 16
    %v76 = vld [vmem:[%s75] sm:$0xf]
    %v77 = vld [vmem:[%s75 + $0x4] sm:$0xf]
    %v78 = vld [vmem:[%s75 + $0x8] sm:$0xf]
    %v79 = vld [vmem:[%s75 + $0xc] sm:$0xf]
    %s80 = scalar_lea.vmem %s2, 1
    %v81 = vld [vmem:[%s80] sm:$0x1]
    %v83 = vperm.slane %v81, 0
    %v89 = vunpack.c.l.b16 %v76
    %v90 = vunpack.c.l.b16 %v77
    %v91 = vunpack.c.l.b16 %v78
    %v92 = vunpack.c.l.b16 %v79
    %v93 = vpack.c.b16 %v90, %v89
    %v94 = vpack.c.b16 %v92, %v91
    %v98 = vsel %vm56, %v74, 0
    %100 = vmatpush.bf16.msra.mxu0 0
    %101 = vmatpush.bf16.msra.mxu0 0
    %102 = vmatpush.bf16.msra.mxu0 0
    %103 = vmatpush.bf16.msra.mxu0 0
    %104 = vmatpush.bf16.msra.mxu0 0
    %105 = vmatpush.bf16.msra.mxu0 0
    %106 = vmatpush.bf16.msra.mxu0 %v94
    %107 = vmatpush.bf16.msra.mxu0 %v93
    %108 = vmatmul.bf16.gmra.mxu0 %v98
    %v109 = vpop.f32.mrf.mxu0
    %v110 = vadd.f32 %v83, %v109
    %v111 = vpop.f32.mrf.mxu0
    %112 = vdwg.mxu0
    %v113 = vmax.f32 %v110, 0.0
    %v114 = vpack.c.bf16 %v113, %v113
    %s115 = scalar_lea.vmem [#allocation2], 32
    %v116 = vld [vmem:[%s115] sm:$0xf]
    %v117 = vld [vmem:[%s115 + $0x4] sm:$0xf]
    %v118 = vld [vmem:[%s115 + $0x8] sm:$0xf]
    %v119 = vld [vmem:[%s115 + $0xc] sm:$0xf]
    %s120 = scalar_lea.vmem %s2, 2
    %v121 = vld [vmem:[%s120] sm:$0x1]
    %v123 = vperm.slane %v121, 0
    %v129 = vunpack.c.l.b16 %v116
    %v130 = vunpack.c.l.b16 %v117
    %v131 = vunpack.c.l.b16 %v118
    %v132 = vunpack.c.l.b16 %v119
    %v133 = vpack.c.b16 %v130, %v129
    %v134 = vpack.c.b16 %v132, %v131
    %v138 = vsel %vm56, %v114, 0
    %140 = vmatpush.bf16.msra.mxu0 0
    %141 = vmatpush.bf16.msra.mxu0 0
    %142 = vmatpush.bf16.msra.mxu0 0
    %143 = vmatpush.bf16.msra.mxu0 0
    %144 = vmatpush.bf16.msra.mxu0 0
    %145 = vmatpush.bf16.msra.mxu0 0
    %146 = vmatpush.bf16.msra.mxu0 %v134
    %147 = vmatpush.bf16.msra.mxu0 %v133
    %148 = vmatmul.bf16.gmra.mxu0 %v138
    %v149 = vpop.f32.mrf.mxu0
    %v150 = vadd.f32 %v123, %v149
    %v151 = vpop.f32.mrf.mxu0
    %152 = vdwg.mxu0
    %v153 = vpack.c.bf16 %v150, %v150
    %s154 = scalar_lea.vmem [#allocation2], 48
    %v155 = vld [vmem:[%s154] sm:$0xf]
    %v156 = vld [vmem:[%s154 + $0x4] sm:$0xf]
    %v157 = vld [vmem:[%s154 + $0x8] sm:$0xf]
    %v158 = vld [vmem:[%s154 + $0xc] sm:$0xf]
    %s159 = scalar_lea.vmem %s2, 3
    %v160 = vld [vmem:[%s159] sm:$0x1]
    %v162 = vperm.slane %v160, 0
    %v168 = vunpack.c.l.b16 %v155
    %v169 = vunpack.c.l.b16 %v156
    %v170 = vunpack.c.l.b16 %v157
    %v171 = vunpack.c.l.b16 %v158
    %v172 = vpack.c.b16 %v169, %v168
    %v173 = vpack.c.b16 %v171, %v170
    %v177 = vsel %vm56, %v153, 0
    %179 = vmatpush.bf16.msra.mxu0 0
    %180 = vmatpush.bf16.msra.mxu0 0
    %181 = vmatpush.bf16.msra.mxu0 0
    %182 = vmatpush.bf16.msra.mxu0 0
    %183 = vmatpush.bf16.msra.mxu0 0
    %184 = vmatpush.bf16.msra.mxu0 0
    %185 = vmatpush.bf16.msra.mxu0 %v173
    %186 = vmatpush.bf16.msra.mxu0 %v172
    %187 = vmatmul.bf16.gmra.mxu0 %v177
    %v188 = vpop.f32.mrf.mxu0
    %v189 = vadd.f32 %v162, %v188
    %v190 = vpop.f32.mrf.mxu0
    %191 = vdwg.mxu0
    %192 = vst [vmem:[%s4] sm:$0xff] %v189
    %s193 = scalar_lea.vmem [#allocation2], 64
    %v194 = vld [vmem:[%s193] sm:$0xf]
    %v195 = vld [vmem:[%s193 + $0x4] sm:$0xf]
    %v196 = vld [vmem:[%s193 + $0x8] sm:$0xf]
    %v197 = vld [vmem:[%s193 + $0xc] sm:$0xf]
    %s198 = scalar_lea.vmem %s2, 4
    %v199 = vld [vmem:[%s198] sm:$0x1]
    %v201 = vperm.slane %v199, 0
    %v207 = vunpack.c.l.b16 %v194
    %v208 = vunpack.c.l.b16 %v195
    %v209 = vunpack.c.l.b16 %v196
    %v210 = vunpack.c.l.b16 %v197
    %v211 = vpack.c.b16 %v208, %v207
    %v212 = vpack.c.b16 %v210, %v209
    %215 = vmatpush.bf16.msra.mxu0 0
    %216 = vmatpush.bf16.msra.mxu0 0
    %217 = vmatpush.bf16.msra.mxu0 0
    %218 = vmatpush.bf16.msra.mxu0 0
    %219 = vmatpush.bf16.msra.mxu0 0
    %220 = vmatpush.bf16.msra.mxu0 0
    %221 = vmatpush.bf16.msra.mxu0 %v212
    %222 = vmatpush.bf16.msra.mxu0 %v211
    %223 = vmatmul.bf16.gmra.mxu0 %v177
    %v224 = vpop.f32.mrf.mxu0
    %v225 = vadd.f32 %v201, %v224
    %v226 = vpop.f32.mrf.mxu0
    %227 = vdwg.mxu0
    %v228 = vmax.f32 %v225, 0.0
    %v229 = vpack.c.bf16 %v228, %v228
    %s230 = scalar_lea.vmem [#allocation2], 80
    %v231 = vld [vmem:[%s230] sm:$0xf]
    %v232 = vld [vmem:[%s230 + $0x4] sm:$0xf]
    %v233 = vld [vmem:[%s230 + $0x8] sm:$0xf]
    %v234 = vld [vmem:[%s230 + $0xc] sm:$0xf]
    %s235 = scalar_lea.vmem %s2, 5
    %v236 = vld [vmem:[%s235] sm:$0x1]
    %v238 = vperm.slane %v236, 0
    %v244 = vunpack.c.l.b16 %v231
    %v245 = vunpack.c.l.b16 %v232
    %v246 = vunpack.c.l.b16 %v233
    %v247 = vunpack.c.l.b16 %v234
    %v248 = vpack.c.b16 %v245, %v244
    %v249 = vpack.c.b16 %v247, %v246
    %v253 = vsel %vm56, %v229, 0
    %255 = vmatpush.bf16.msra.mxu0 0
    %256 = vmatpush.bf16.msra.mxu0 0
    %257 = vmatpush.bf16.msra.mxu0 0
    %258 = vmatpush.bf16.msra.mxu0 0
    %259 = vmatpush.bf16.msra.mxu0 0
    %260 = vmatpush.bf16.msra.mxu0 0
    %261 = vmatpush.bf16.msra.mxu0 %v249
    %262 = vmatpush.bf16.msra.mxu0 %v248
    %263 = vmatmul.bf16.gmra.mxu0 %v253
    %v264 = vpop.f32.mrf.mxu0
    %v265 = vadd.f32 %v238, %v264
    %v266 = vpop.f32.mrf.mxu0
    %267 = vdwg.mxu0
    %v268 = vmax.f32 %v265, 0.0
    %v269 = vpack.c.bf16 %v268, %v268
    %s270 = scalar_lea.vmem [#allocation2], 96
    %v271 = vld [vmem:[%s270] sm:$0xf]
    %v272 = vld [vmem:[%s270 + $0x4] sm:$0xf]
    %v273 = vld [vmem:[%s270 + $0x8] sm:$0xf]
    %v274 = vld [vmem:[%s270 + $0xc] sm:$0xf]
    %s275 = scalar_lea.vmem %s2, 6
    %v276 = vld [vmem:[%s275] sm:$0x1]
    %v278 = vperm.slane %v276, 0
    %v284 = vunpack.c.l.b16 %v271
    %v285 = vunpack.c.l.b16 %v272
    %v286 = vunpack.c.l.b16 %v273
    %v287 = vunpack.c.l.b16 %v274
    %v288 = vpack.c.b16 %v285, %v284
    %v289 = vpack.c.b16 %v287, %v286
    %v293 = vsel %vm56, %v269, 0
    %295 = vmatpush.bf16.msra.mxu0 0
    %296 = vmatpush.bf16.msra.mxu0 0
    %297 = vmatpush.bf16.msra.mxu0 0
    %298 = vmatpush.bf16.msra.mxu0 0
    %299 = vmatpush.bf16.msra.mxu0 0
    %300 = vmatpush.bf16.msra.mxu0 0
    %301 = vmatpush.bf16.msra.mxu0 %v289
    %302 = vmatpush.bf16.msra.mxu0 %v288
    %303 = vmatmul.bf16.gmra.mxu0 %v293
    %v304 = vpop.f32.mrf.mxu0
    %v305 = vadd.f32 %v278, %v304
    %v306 = vpop.f32.mrf.mxu0
    %307 = vdwg.mxu0
    %v308 = vmax.f32 %v305, 0.0
    %v309 = vpack.c.bf16 %v308, %v308
    %s310 = scalar_lea.vmem [#allocation2], 112
    %v311 = vld [vmem:[%s310] sm:$0xf]
    %v312 = vld [vmem:[%s310 + $0x4] sm:$0xf]
    %v313 = vld [vmem:[%s310 + $0x8] sm:$0xf]
    %v314 = vld [vmem:[%s310 + $0xc] sm:$0xf]
    %s315 = scalar_lea.vmem %s2, 7
    %v316 = vld [vmem:[%s315] sm:$0x1]
    %v318 = vperm.slane %v316, 0
    %v324 = vunpack.c.l.b16 %v311
    %v325 = vunpack.c.l.b16 %v312
    %v326 = vunpack.c.l.b16 %v313
    %v327 = vunpack.c.l.b16 %v314
    %v328 = vpack.c.b16 %v325, %v324
    %v329 = vpack.c.b16 %v327, %v326
    %v333 = vsel %vm56, %v309, 0
    %335 = vmatpush.bf16.msra.mxu0 0
    %336 = vmatpush.bf16.msra.mxu0 0
    %337 = vmatpush.bf16.msra.mxu0 0
    %338 = vmatpush.bf16.msra.mxu0 0
    %339 = vmatpush.bf16.msra.mxu0 0
    %340 = vmatpush.bf16.msra.mxu0 0
    %341 = vmatpush.bf16.msra.mxu0 %v329
    %342 = vmatpush.bf16.msra.mxu0 %v328
    %343 = vmatmul.bf16.gmra.mxu0 %v333
    %v344 = vpop.f32.mrf.mxu0
    %v345 = vadd.f32 %v318, %v344
    %v346 = vpop.f32.mrf.mxu0
    %347 = vdwg.mxu0
    %v348 = vmax.f32 %v345, 0.0
    %v349 = vpack.c.bf16 %v348, %v348
    %s350 = scalar_lea.vmem [#allocation2], 128
    %v351 = vld [vmem:[%s350] sm:$0xf]
    %v352 = vld [vmem:[%s350 + $0x4] sm:$0xf]
    %v353 = vld [vmem:[%s350 + $0x8] sm:$0xf]
    %v354 = vld [vmem:[%s350 + $0xc] sm:$0xf]
    %s355 = scalar_lea.vmem %s2, 8
    %v356 = vld [vmem:[%s355] sm:$0x1]
    %v358 = vperm.slane %v356, 0
    %v364 = vunpack.c.l.b16 %v351
    %v365 = vunpack.c.l.b16 %v352
    %v366 = vunpack.c.l.b16 %v353
    %v367 = vunpack.c.l.b16 %v354
    %v368 = vpack.c.b16 %v365, %v364
    %v369 = vpack.c.b16 %v367, %v366
    %v373 = vsel %vm56, %v349, 0
    %375 = vmatpush.bf16.msra.mxu0 0
    %376 = vmatpush.bf16.msra.mxu0 0
    %377 = vmatpush.bf16.msra.mxu0 0
    %378 = vmatpush.bf16.msra.mxu0 0
    %379 = vmatpush.bf16.msra.mxu0 0
    %380 = vmatpush.bf16.msra.mxu0 0
    %381 = vmatpush.bf16.msra.mxu0 %v369
    %382 = vmatpush.bf16.msra.mxu0 %v368
    %383 = vmatmul.bf16.gmra.mxu0 %v373
    %v384 = vpop.f32.mrf.mxu0
    %v385 = vadd.f32 %v358, %v384
    %v386 = vpop.f32.mrf.mxu0
    %387 = vdwg.mxu0
    %388 = vst [vmem:[#allocation5] sm:$0xff] %v385
    // Predicated region
    $region18: #{autoencoder_forward.1} parent=1 // pred_check
      _
    $region19: #{autoencoder_forward.1} parent=1 // pred_check_branch
      %390 = sbr.rel (0) target = $region21
    $region20: #{autoencoder_forward.1} parent=1 // pred_region
      %392 = vsyncadd [#allocation4], 0
      %s394 = sshll.u32 [#allocation5], 4
      %s395 = int_to_ptr.vmem [resolvable:$true] %s394
      %s396 = sshll.u32 %s3, 4
      %s397 = int_to_ptr.hbm [resolvable:$true] %s396
      %399 = dma.vmem_to_hbm [thread:$0]  %s395, 128, %s397, [#allocation4]
    $region21: #{autoencoder_forward.1} parent=1 // pred_fallthru
      _
    // Predicated region
    $region22: #{autoencoder_forward.1} parent=1 // pred_check
      _
    $region23: #{autoencoder_forward.1} parent=1 // pred_check_branch
      %401 = sbr.rel (0) target = $region25
    $region24: #{autoencoder_forward.1} parent=1 // pred_region
      _
    $region25: #{autoencoder_forward.1} parent=1 // pred_fallthru
      _
    // Predicated region
    $region26: #{autoencoder_forward.1} parent=1 // pred_check
      _
    $region27: #{autoencoder_forward.1} parent=1 // pred_check_branch
      %403 = sbr.rel (0) target = $region29
    $region28: #{autoencoder_forward.1} parent=1 // pred_region
      %405 = dma.done [#allocation4], 128
    $region29: #{autoencoder_forward.1} parent=1 // pred_fallthru
      _
    // Predicated region
    $region30: #{autoencoder_forward.1} parent=1 // pred_check
      _
    $region31: #{autoencoder_forward.1} parent=1 // pred_check_branch
      %407 = sbr.rel (0) target = $region33
    $region32: #{autoencoder_forward.1} parent=1 // pred_region
      _
    $region33: #{autoencoder_forward.1} parent=1 // pred_fallthru
      _
    %408 = vsyncpa [#allocation3], 1
    %409 = vsyncpa [#allocation4], 1

</llo_original>
